<compile_context>
chip_gen: v7x
topology: tpu7x:2x2x1
jax: 0.10.0
libtpu: 0.0.40
codegen_flags: <defaults>
</compile_context>

<pallas_src>
import functools

import jax
import jax.numpy as jnp
from jax.experimental import pallas as pl
from jax.experimental.pallas import tpu as pltpu

BN_EPS = 1e-5  # PyTorch BatchNorm1d default eps


def _fp_fused_kernel(x_ref, *rest, flags):
    """Fused forward for the whole FP stack.

    Ref order: x, then per layer:
      - BN layer      : W_t (C_in, C_out), gamma (1, C_out), beta (1, C_out)
      - plain layer   : W_t (C_in, C_out), bias  (1, C_out)
    followed by the single output ref.
    `flags[i]` is True iff layer i has BatchNorm+ReLU.
    """
    o_ref = rest[-1]
    params = rest[:-1]

    y = x_ref[...]
    inv_n = 1.0 / x_ref.shape[0]  # static batch size

    idx = 0
    for has_bn in flags:
        w_ref = params[idx]
        idx += 1
        # Linear on the MXU, f32 accumulation.
        y = jnp.dot(y, w_ref[...], preferred_element_type=jnp.float32)
        if has_bn:
            g_ref = params[idx]
            beta_ref = params[idx + 1]
            idx += 2
            # One-pass batch stats: E[y], E[y^2]  (bias-before-BN was dropped;
            # it is cancelled exactly by the mean subtraction).
            s = jnp.sum(y, axis=0, keepdims=True)
            sq = jnp.sum(y * y, axis=0, keepdims=True)
            mean = s * inv_n
            var = jnp.maximum(sq * inv_n - mean * mean, 0.0)
            # Fold normalize + affine into a single scale/shift FMA.
            scale = g_ref[...] * jax.lax.rsqrt(var + BN_EPS)
            shift = beta_ref[...] - mean * scale
            y = jnp.maximum(y * scale + shift, 0.0)  # BN + ReLU
        else:
            b_ref = params[idx]
            idx += 1
            y = y + b_ref[...]

    o_ref[...] = y.astype(o_ref.dtype)


def _fp_apply(x, params, *, flags, c_out):
    """Single fused pallas_call over the whole layer stack."""
    n = x.shape[0]
    kernel = functools.partial(_fp_fused_kernel, flags=flags)
    n_inputs = 1 + len(params)
    return pl.pallas_call(
        kernel,
        out_shape=jax.ShapeDtypeStruct((n, c_out), jnp.float32),
        in_specs=[pl.BlockSpec(memory_space=pltpu.MemorySpace.VMEM)] * n_inputs,
        out_specs=pl.BlockSpec(memory_space=pltpu.MemorySpace.VMEM),
    )(x, *params)


class FP:
    """JAX/Pallas port of the PyTorch FP module's forward pass (fully fused)."""

    def __init__(self, inp_dim, L, last, key):
        self.last = last
        flags = []
        params = []
        n_layer = len(L)
        c_in = inp_dim
        for i in range(n_layer):
            key, kw, kb = jax.random.split(key, 3)
            bound = 1.0 / (c_in ** 0.5)  # PyTorch Linear default init range
            w = jax.random.uniform(kw, (L[i], c_in), jnp.float32, -bound, bound)
            b = jax.random.uniform(kb, (L[i],), jnp.float32, -bound, bound)
            has_bn_relu = not (last and i == n_layer - 1)
            # Pre-lay-out parameters once (hoisted out of the forward):
            #   W -> (C_in, C_out) so the kernel does a plain X @ W.
            params.append(jnp.transpose(w))
            if has_bn_relu:
                # Bias is cancelled by training-mode BN's mean subtraction;
                # don't pass it at all.  BN affine params (PyTorch init).
                params.append(jnp.ones((1, L[i]), jnp.float32))   # gamma
                params.append(jnp.zeros((1, L[i]), jnp.float32))  # beta
            else:
                params.append(b.reshape(1, -1))
            flags.append(has_bn_relu)
            c_in = L[i]

        self.flags = tuple(flags)
        self.params = tuple(params)
        self.out_dim = L[-1]
        # Jit the fused forward; flags / out_dim are static (closed over).
        self._forward = jax.jit(
            functools.partial(_fp_apply, flags=self.flags, c_out=self.out_dim)
        )
        # TODO(synk): torch.nn.Dropout(0.5) (appended only when last=False) is
        # stochastic in train mode / identity in eval mode; not applied here.
        # TODO(synk): BN running_mean/running_var are not tracked, so an
        # eval-mode (running-stats) forward cannot be reproduced.

    def __call__(self, x):
        return self._forward(x, self.params)


if __name__ == "__main__":
    key = jax.random.PRNGKey(0)
    key, kx, kp = jax.random.split(key, 3)

    N, INP_DIM = 8, 32
    L = [64, 16]
    model = FP(INP_DIM, L, last=True, key=kp)

    x = jax.random.normal(kx, (N, INP_DIM), jnp.float32)
    y = model(x)
    y = jax.block_until_ready(y)
    assert y.shape == (N, L[-1]) and y.dtype == jnp.float32
    print("KERNEL_OK")
</pallas_src>

<mosaic_0001>
module attributes {stable_mosaic.version = 11 : i64} {
  func.func @_fp_fused_kernel(%arg0: memref<8x32xf32, #tpu.memory_space<vmem>>, %arg1: memref<32x64xf32, #tpu.memory_space<vmem>>, %arg2: memref<1x64xf32, #tpu.memory_space<vmem>>, %arg3: memref<1x64xf32, #tpu.memory_space<vmem>>, %arg4: memref<64x16xf32, #tpu.memory_space<vmem>>, %arg5: memref<1x16xf32, #tpu.memory_space<vmem>>, %arg6: memref<8x16xf32, #tpu.memory_space<vmem>>) attributes {dimension_semantics = [], scalar_prefetch = 0 : i64, scratch_operands = 0 : i64, tpu.core_type = #tpu.core_type<tc>} {
    %c0 = arith.constant 0 : index
    %c0_0 = arith.constant 0 : index
    %0 = vector.load %arg0[%c0, %c0_0] : memref<8x32xf32, #tpu.memory_space<vmem>>, vector<8x32xf32>
    %c0_1 = arith.constant 0 : index
    %c0_2 = arith.constant 0 : index
    %1 = vector.load %arg1[%c0_1, %c0_2] : memref<32x64xf32, #tpu.memory_space<vmem>>, vector<32x64xf32>
    %cst = arith.constant dense<0.000000e+00> : vector<8x64xf32>
    %2 = tpu.matmul %0, %1, %cst {dimension_numbers = #tpu.dot_dimension_numbers<[1], [0], [0], [1], [0, 0, 1, 1], [], []>} : vector<8x32xf32>, vector<32x64xf32>, vector<8x64xf32> -> vector<8x64xf32>
    %cst_3 = arith.constant dense<0.000000e+00> : vector<64xf32>
    %3 = vector.multi_reduction <add>, %2, %cst_3 [0] : vector<8x64xf32> to vector<64xf32>
    %4 = vector.shape_cast %3 : vector<64xf32> to vector<1x64xf32>
    %5 = arith.mulf %2, %2 : vector<8x64xf32>
    %cst_4 = arith.constant dense<0.000000e+00> : vector<64xf32>
    %6 = vector.multi_reduction <add>, %5, %cst_4 [0] : vector<8x64xf32> to vector<64xf32>
    %7 = vector.shape_cast %6 : vector<64xf32> to vector<1x64xf32>
    %cst_5 = arith.constant 1.250000e-01 : f32
    %8 = vector.broadcast %cst_5 : f32 to vector<1x64xf32>
    %9 = arith.mulf %4, %8 : vector<1x64xf32>
    %cst_6 = arith.constant 1.250000e-01 : f32
    %10 = vector.broadcast %cst_6 : f32 to vector<1x64xf32>
    %11 = arith.mulf %7, %10 : vector<1x64xf32>
    %12 = arith.mulf %9, %9 : vector<1x64xf32>
    %13 = arith.subf %11, %12 : vector<1x64xf32>
    %cst_7 = arith.constant 0.000000e+00 : f32
    %14 = vector.broadcast %cst_7 : f32 to vector<1x64xf32>
    %15 = arith.maximumf %13, %14 : vector<1x64xf32>
    %c0_8 = arith.constant 0 : index
    %c0_9 = arith.constant 0 : index
    %16 = vector.load %arg2[%c0_8, %c0_9] : memref<1x64xf32, #tpu.memory_space<vmem>>, vector<1x64xf32>
    %cst_10 = arith.constant 9.99999974E-6 : f32
    %17 = vector.broadcast %cst_10 : f32 to vector<1x64xf32>
    %18 = arith.addf %15, %17 : vector<1x64xf32>
    %19 = math.rsqrt %18 : vector<1x64xf32>
    %20 = arith.mulf %16, %19 : vector<1x64xf32>
    %c0_11 = arith.constant 0 : index
    %c0_12 = arith.constant 0 : index
    %21 = vector.load %arg3[%c0_11, %c0_12] : memref<1x64xf32, #tpu.memory_space<vmem>>, vector<1x64xf32>
    %22 = arith.mulf %9, %20 : vector<1x64xf32>
    %23 = arith.subf %21, %22 : vector<1x64xf32>
    %24 = vector.broadcast %20 : vector<1x64xf32> to vector<8x64xf32>
    %25 = arith.mulf %2, %24 : vector<8x64xf32>
    %26 = vector.broadcast %23 : vector<1x64xf32> to vector<8x64xf32>
    %27 = arith.addf %25, %26 : vector<8x64xf32>
    %cst_13 = arith.constant 0.000000e+00 : f32
    %28 = vector.broadcast %cst_13 : f32 to vector<8x64xf32>
    %29 = arith.maximumf %27, %28 : vector<8x64xf32>
    %c0_14 = arith.constant 0 : index
    %c0_15 = arith.constant 0 : index
    %30 = vector.load %arg4[%c0_14, %c0_15] : memref<64x16xf32, #tpu.memory_space<vmem>>, vector<64x16xf32>
    %cst_16 = arith.constant dense<0.000000e+00> : vector<8x16xf32>
    %31 = tpu.matmul %29, %30, %cst_16 {dimension_numbers = #tpu.dot_dimension_numbers<[1], [0], [0], [1], [0, 0, 1, 1], [], []>} : vector<8x64xf32>, vector<64x16xf32>, vector<8x16xf32> -> vector<8x16xf32>
    %c0_17 = arith.constant 0 : index
    %c0_18 = arith.constant 0 : index
    %32 = vector.load %arg5[%c0_17, %c0_18] : memref<1x16xf32, #tpu.memory_space<vmem>>, vector<1x16xf32>
    %33 = vector.broadcast %32 : vector<1x16xf32> to vector<8x16xf32>
    %34 = arith.addf %31, %33 : vector<8x16xf32>
    %c0_19 = arith.constant 0 : index
    %c0_20 = arith.constant 0 : index
    %35 = vector.load %arg6[%c0_19, %c0_20] : memref<8x16xf32, #tpu.memory_space<vmem>>, vector<8x16xf32>
    tpu.vector_store %arg6[%c0_19, %c0_20], %34 {strides = array<i32>} : memref<8x16xf32, #tpu.memory_space<vmem>>, vector<8x16xf32>,
    return
  }
}

</mosaic_0001>

<llo_original>
// kernel: _fp_apply.1
$region0: #{_fp_apply.1}
  #allocation0 [shape = 'u32[]', space=smem, size = 0x4, offset = 0x4, fixed_abs, tag = 'smem constant byte address 0x4 - core index']
  #allocation1 [shape = 'u32[144,128]{1,0:T(1,128)}', space=vmem, size = 0x12000, scoped, tag = 'internal scratch']
  %s0 = inlined_call_operand.vmem [shape: f32[8,32], index: 0, kind: input, shape index: {}]
  %s1 = inlined_call_operand.vmem [shape: f32[32,64], index: 1, kind: input, shape index: {}]
  %s2 = inlined_call_operand.vmem [shape: f32[1,64], index: 2, kind: input, shape index: {}]
  %s3 = inlined_call_operand.vmem [shape: f32[1,64], index: 3, kind: input, shape index: {}]
  %s4 = inlined_call_operand.vmem [shape: f32[64,16], index: 4, kind: input, shape index: {}]
  %s5 = inlined_call_operand.vmem [shape: f32[1,16], index: 5, kind: input, shape index: {}]
  %s6 = inlined_call_operand.hbm [shape: f32[8,16], index: 6, kind: output, shape index: {}]
  %s7 = sld [smem:[#allocation0]]
  $region34: #{_fp_apply.1} parent=0
    _
  %s9 = ssub.s32 1, %s7
  %s10 = scalar_select 0, %s9, %s7
  $region1: #{_fp_apply.1} parent=0
    #allocation2 [shape = 'u8[4096]{0}', space=vmem, size = 0x1000, scoped, tag = 'output window, operand 0, single buffered']
    #allocation3 [shape = 's32[1]{0}', space=sflag, size = 0x4, scoped, tag = 'scoped memory for _fp_apply.1']
    %11 = vsyncpa [#allocation3], 0
    // Predicated region
    $region2: #{_fp_apply.1} parent=1 // pred_check
      _
    $region3: #{_fp_apply.1} parent=1 // pred_check_branch
      %13 = sbr.rel (0) target = $region5
    $region4: #{_fp_apply.1} parent=1 // pred_region
      _
    $region5: #{_fp_apply.1} parent=1 // pred_fallthru
      _
    // Predicated region
    $region6: #{_fp_apply.1} parent=1 // pred_check
      _
    $region7: #{_fp_apply.1} parent=1 // pred_check_branch
      %15 = sbr.rel (0) target = $region9
    $region8: #{_fp_apply.1} parent=1 // pred_region
      _
    $region9: #{_fp_apply.1} parent=1 // pred_fallthru
      _
    // Predicated region
    $region10: #{_fp_apply.1} parent=1 // pred_check
      _
    $region11: #{_fp_apply.1} parent=1 // pred_check_branch
      %17 = sbr.rel (0) target = $region13
    $region12: #{_fp_apply.1} parent=1 // pred_region
      _
    $region13: #{_fp_apply.1} parent=1 // pred_fallthru
      _
    // Predicated region
    $region14: #{_fp_apply.1} parent=1 // pred_check
      _
    $region15: #{_fp_apply.1} parent=1 // pred_check_branch
      %19 = sbr.rel (0) target = $region17
    $region16: #{_fp_apply.1} parent=1 // pred_region
      _
    $region17: #{_fp_apply.1} parent=1 // pred_fallthru
      _
    // Predicated region
    $region18: #{_fp_apply.1} parent=1 // pred_check
      _
    $region19: #{_fp_apply.1} parent=1 // pred_check_branch
      %21 = sbr.rel (0) target = $region21
    $region20: #{_fp_apply.1} parent=1 // pred_region
      _
    $region21: #{_fp_apply.1} parent=1 // pred_fallthru
      _
    // Predicated region
    $region22: #{_fp_apply.1} parent=1 // pred_check
      _
    $region23: #{_fp_apply.1} parent=1 // pred_check_branch
      %23 = sbr.rel (0) target = $region25
    $region24: #{_fp_apply.1} parent=1 // pred_region
      _
    $region25: #{_fp_apply.1} parent=1 // pred_fallthru
      _
    %v24 = vld [vmem:[%s0] sm:$0xff]
    %v25 = vld [vmem:[%s1] sm:$0xff]
    %v26 = vld [vmem:[%s1 + $0x8] sm:$0xff]
    %v27 = vld [vmem:[%s1 + $0x10] sm:$0xff]
    %v28 = vld [vmem:[%s1 + $0x18] sm:$0xff]
    %vm29 = vcmask 261120
    %v31 = vsel %vm29, %v24, 0
    %33 = vmatprep.subr.mxu0 0.0
    %34 = vmatpush1.msra.mxu0 %v25
    %35 = vmatprep.subr.mxu0 0.0
    %36 = vmatpush1.msra.mxu0 %v26
    %37 = vmatprep.subr.mxu0 0.0
    %38 = vmatpush1.msra.mxu0 %v27
    %39 = vmatprep.subr.mxu0 0.0
    %40 = vmatpush1.msra.mxu0 %v28
    %41 = vmatprep.subr.mxu0 0.0
    %42 = vmatpush1.msra.mxu0 0.0
    %43 = vmatprep.subr.mxu0 0.0
    %44 = vmatpush1.msra.mxu0 0.0
    %45 = vmatprep.subr.mxu0 0.0
    %46 = vmatpush1.msra.mxu0 0.0
    %47 = vmatprep.subr.mxu0 0.0
    %48 = vmatpush1.msra.mxu0 0.0
    %49 = vmatprep.subr.mxu0 0.0
    %50 = vmatpush1.msra.mxu0 0.0
    %51 = vmatprep.subr.mxu0 0.0
    %52 = vmatpush1.msra.mxu0 0.0
    %53 = vmatprep.subr.mxu0 0.0
    %54 = vmatpush1.msra.mxu0 0.0
    %55 = vmatprep.subr.mxu0 0.0
    %56 = vmatpush1.msra.mxu0 0.0
    %57 = vmatprep.subr.mxu0 0.0
    %58 = vmatpush1.msra.mxu0 0.0
    %59 = vmatprep.subr.mxu0 0.0
    %60 = vmatpush1.msra.mxu0 0.0
    %61 = vmatprep.subr.mxu0 0.0
    %62 = vmatpush1.msra.mxu0 0.0
    %63 = vmatprep.subr.mxu0 0.0
    %64 = vmatpush1.msra.mxu0 0.0
    %65 = vmatprep.subr.mxu0 0.0
    %66 = vmatpush1.msra.mxu0 0.0
    %67 = vmatprep.subr.mxu0 0.0
    %68 = vmatpush1.msra.mxu0 0.0
    %69 = vmatprep.subr.mxu0 0.0
    %70 = vmatpush1.msra.mxu0 0.0
    %71 = vmatprep.subr.mxu0 0.0
    %72 = vmatpush1.msra.mxu0 0.0
    %73 = vmatprep.subr.mxu0 0.0
    %74 = vmatpush1.msra.mxu0 0.0
    %75 = vmatprep.subr.mxu0 0.0
    %76 = vmatpush1.msra.mxu0 0.0
    %77 = vmatprep.subr.mxu0 0.0
    %78 = vmatpush1.msra.mxu0 0.0
    %79 = vmatprep.subr.mxu0 0.0
    %80 = vmatpush1.msra.mxu0 0.0
    %81 = vmatprep.subr.mxu0 0.0
    %82 = vmatpush1.msra.mxu0 0.0
    %83 = vmatprep.subr.mxu0 0.0
    %84 = vmatpush1.msra.mxu0 0.0
    %85 = vmatprep.subr.mxu0 0.0
    %86 = vmatpush1.msra.mxu0 0.0
    %87 = vmatprep.subr.mxu0 0.0
    %88 = vmatpush1.msra.mxu0 0.0
    %89 = vmatprep.subr.mxu0 0.0
    %90 = vmatpush1.msra.mxu0 0.0
    %91 = vmatprep.subr.mxu0 0.0
    %92 = vmatpush1.msra.mxu0 0.0
    %93 = vmatprep.subr.mxu0 0.0
    %94 = vmatpush1.msra.mxu0 0.0
    %95 = vmatprep.subr.mxu0 0.0
    %96 = vmatpush1.msra.mxu0 0.0
    %97 = vmatprep.mubr.f32.mxu0 0.0
    %98 = vmatmul.mubr.f32.gmra.mrb[0].mxu0 %v31
    %v99 = vpop.f32.mrb[0].mxu0
    %v100 = vadd.f32 0.0, %v99
    %v101 = vpop.f32.mrb[0].mxu0
    %102 = vdwg.mxu0
    %vm103 = vcmask 523264
    %v104 = vsel %vm103, %v100, 0.0
    %v105 = vrot.slane %v104, 4
    %v106 = vadd.f32 %v104, %v105
    %v107 = vrot.slane %v106, 2
    %v108 = vadd.f32 %v106, %v107
    %v109 = vrot.slane %v108, 1
    %v110 = vadd.f32 %v108, %v109
    %v111 = vmul.f32 %v100, %v100
    %v112 = vsel %vm103, %v111, 0.0
    %v113 = vrot.slane %v112, 4
    %v114 = vadd.f32 %v112, %v113
    %v115 = vrot.slane %v114, 2
    %v116 = vadd.f32 %v114, %v115
    %v117 = vrot.slane %v116, 1
    %v118 = vadd.f32 %v116, %v117
    %v119 = vmul.f32 %v110, 0.125
    %v120 = vmul.f32 %v118, 0.125
    %v121 = vmul.f32 %v119, %v119
    %v122 = vsub.f32 %v120, %v121
    %v123 = vmax.f32 %v122, 0.0
    %v124 = vld [vmem:[%s2] sm:$0x1]
    %v125 = vadd.f32 %v123, 1e-05
    %v126 = vrsqrt.pop %v125
    %v127 = vmul.f32 %v124, %v126
    %v128 = vld [vmem:[%s3] sm:$0x1]
    %v129 = vmul.f32 %v119, %v127
    %v130 = vsub.f32 %v128, %v129
    %v132 = vlaneseq
    %v133 = vshrl.u32 %v132, 7
    %v134 = vsub.s32 0, %v133
    %v135 = vrot.slane %v127, %v134
    %v137 = vmul.f32 %v100, %v135
    %v139 = vlaneseq
    %v140 = vshrl.u32 %v139, 7
    %v141 = vsub.s32 0, %v140
    %v142 = vrot.slane %v130, %v141
    %v144 = vadd.f32 %v137, %v142
    %v145 = vmax.f32 %v144, 0.0
    %v146 = vld [vmem:[%s4] sm:$0xff]
    %v147 = vld [vmem:[%s4 + $0x8] sm:$0xff]
    %v148 = vld [vmem:[%s4 + $0x10] sm:$0xff]
    %v149 = vld [vmem:[%s4 + $0x18] sm:$0xff]
    %v150 = vld [vmem:[%s4 + $0x20] sm:$0xff]
    %v151 = vld [vmem:[%s4 + $0x28] sm:$0xff]
    %v152 = vld [vmem:[%s4 + $0x30] sm:$0xff]
    %v153 = vld [vmem:[%s4 + $0x38] sm:$0xff]
    %v154 = vld [vmem:[%s5] sm:$0x1]
    %v156 = vlaneseq
    %v157 = vshrl.u32 %v156, 7
    %v158 = vsub.s32 0, %v157
    %v159 = vrot.slane %v154, %v158
    %v162 = vsel %vm103, %v145, 0
    %164 = vmatprep.subr.mxu0 0.0
    %165 = vmatpush1.msra.mxu0 %v146
    %166 = vmatprep.subr.mxu0 0.0
    %167 = vmatpush1.msra.mxu0 %v147
    %168 = vmatprep.subr.mxu0 0.0
    %169 = vmatpush1.msra.mxu0 %v148
    %170 = vmatprep.subr.mxu0 0.0
    %171 = vmatpush1.msra.mxu0 %v149
    %172 = vmatprep.subr.mxu0 0.0
    %173 = vmatpush1.msra.mxu0 %v150
    %174 = vmatprep.subr.mxu0 0.0
    %175 = vmatpush1.msra.mxu0 %v151
    %176 = vmatprep.subr.mxu0 0.0
    %177 = vmatpush1.msra.mxu0 %v152
    %178 = vmatprep.subr.mxu0 0.0
    %179 = vmatpush1.msra.mxu0 %v153
    %180 = vmatprep.subr.mxu0 0.0
    %181 = vmatpush1.msra.mxu0 0.0
    %182 = vmatprep.subr.mxu0 0.0
    %183 = vmatpush1.msra.mxu0 0.0
    %184 = vmatprep.subr.mxu0 0.0
    %185 = vmatpush1.msra.mxu0 0.0
    %186 = vmatprep.subr.mxu0 0.0
    %187 = vmatpush1.msra.mxu0 0.0
    %188 = vmatprep.subr.mxu0 0.0
    %189 = vmatpush1.msra.mxu0 0.0
    %190 = vmatprep.subr.mxu0 0.0
    %191 = vmatpush1.msra.mxu0 0.0
    %192 = vmatprep.subr.mxu0 0.0
    %193 = vmatpush1.msra.mxu0 0.0
    %194 = vmatprep.subr.mxu0 0.0
    %195 = vmatpush1.msra.mxu0 0.0
    %196 = vmatprep.subr.mxu0 0.0
    %197 = vmatpush1.msra.mxu0 0.0
    %198 = vmatprep.subr.mxu0 0.0
    %199 = vmatpush1.msra.mxu0 0.0
    %200 = vmatprep.subr.mxu0 0.0
    %201 = vmatpush1.msra.mxu0 0.0
    %202 = vmatprep.subr.mxu0 0.0
    %203 = vmatpush1.msra.mxu0 0.0
    %204 = vmatprep.subr.mxu0 0.0
    %205 = vmatpush1.msra.mxu0 0.0
    %206 = vmatprep.subr.mxu0 0.0
    %207 = vmatpush1.msra.mxu0 0.0
    %208 = vmatprep.subr.mxu0 0.0
    %209 = vmatpush1.msra.mxu0 0.0
    %210 = vmatprep.subr.mxu0 0.0
    %211 = vmatpush1.msra.mxu0 0.0
    %212 = vmatprep.subr.mxu0 0.0
    %213 = vmatpush1.msra.mxu0 0.0
    %214 = vmatprep.subr.mxu0 0.0
    %215 = vmatpush1.msra.mxu0 0.0
    %216 = vmatprep.subr.mxu0 0.0
    %217 = vmatpush1.msra.mxu0 0.0
    %218 = vmatprep.subr.mxu0 0.0
    %219 = vmatpush1.msra.mxu0 0.0
    %220 = vmatprep.subr.mxu0 0.0
    %221 = vmatpush1.msra.mxu0 0.0
    %222 = vmatprep.subr.mxu0 0.0
    %223 = vmatpush1.msra.mxu0 0.0
    %224 = vmatprep.subr.mxu0 0.0
    %225 = vmatpush1.msra.mxu0 0.0
    %226 = vmatprep.subr.mxu0 0.0
    %227 = vmatpush1.msra.mxu0 0.0
    %228 = vmatprep.mubr.f32.mxu0 0.0
    %229 = vmatmul.mubr.f32.gmra.mrb[0].mxu0 %v162
    %v230 = vpop.f32.mrb[0].mxu0
    %v231 = vadd.f32 %v159, %v230
    %v232 = vpop.f32.mrb[0].mxu0
    %233 = vdwg.mxu0
    %vm234 = vcmask 130048
    %235 = vst.msk [vmem:[#allocation2] sm:$0xff] %vm234, %v231
    // Predicated region
    $region26: #{_fp_apply.1} parent=1 // pred_check
      _
    $region27: #{_fp_apply.1} parent=1 // pred_check_branch
      %237 = sbr.rel (0) target = $region29
    $region28: #{_fp_apply.1} parent=1 // pred_region
      %s239 = ssub.s32 128, 128
      %240 = vsyncadd [#allocation3], %s239
      %s242 = sshll.u32 [#allocation2], 4
      %s243 = int_to_ptr.vmem [resolvable:$true] %s242
      %245 = dma.vmem_to_hbm [thread:$0]  %s243, 128, %s6, [#allocation3]
    $region29: #{_fp_apply.1} parent=1 // pred_fallthru
      _
    // Predicated region
    $region30: #{_fp_apply.1} parent=1 // pred_check
      _
    $region31: #{_fp_apply.1} parent=1 // pred_check_branch
      %247 = sbr.rel (0) target = $region33
    $region32: #{_fp_apply.1} parent=1 // pred_region
      %248 = dma.done [#allocation3], 128
    $region33: #{_fp_apply.1} parent=1 // pred_fallthru
      _
    %249 = vsyncpa [#allocation3], 1

</llo_original>
